<compile_context>
chip_gen: v7x
topology: tpu7x:2x2x1
jax: 0.10.0
libtpu: 0.0.40
codegen_flags: <defaults>
</compile_context>

<pallas_src>
import functools

import jax
import jax.numpy as jnp
from jax.experimental import pallas as pl
from jax.experimental.pallas import tpu as pltpu  # noqa: F401  (TPU backend)


def _dense_layer_kernel(w_ref, x_ref, o_ref, *, eps, inv_nl):
    # w_ref: (C_out, C_in)   x_ref: (C_in, N*L)   o_ref: (C_out, N*L)
    # Pointwise Conv1d == one MXU GEMM over channels (bias omitted: cancelled by BN).
    y = jnp.dot(w_ref[...], x_ref[...], preferred_element_type=jnp.float32)

    # BatchNorm1d(affine=False), train-mode batch statistics per channel (row).
    # One-pass stats: E[y] and E[y^2] via two lane reductions; biased variance.
    mean = jnp.sum(y, axis=-1, keepdims=True) * inv_nl
    mean_sq = jnp.sum(y * y, axis=-1, keepdims=True) * inv_nl
    var = jnp.maximum(mean_sq - mean * mean, 0.0)

    o_ref[...] = (y - mean) * jax.lax.rsqrt(var + eps)


def dense_layer_forward(x, w, b=None, *, eps=1e-5):
    """x: (N, C_in, L) f32; w: (C_out, C_in) (kernel_size=1 squeezed); b: (C_out,) or None.

    Returns (N, C_out, L) f32.  The conv bias `b` is accepted for interface
    parity with the PyTorch module but is mathematically cancelled by the
    train-mode, affine=False BatchNorm (mean subtraction), so it is not used.
    """
    del b  # cancelled exactly by BN mean subtraction
    n, c_in, L = x.shape
    c_out = w.shape[0]
    nl = n * L

    # Lane-dense view: (N, C_in, L) -> (C_in, N*L).  Layout plumbing in the wrapper.
    x2 = jnp.transpose(x.astype(jnp.float32), (1, 0, 2)).reshape(c_in, nl)

    out2 = pl.pallas_call(
        functools.partial(_dense_layer_kernel, eps=eps, inv_nl=1.0 / nl),
        out_shape=jax.ShapeDtypeStruct((c_out, nl), jnp.float32),
        grid=(1,),
        in_specs=[
            pl.BlockSpec((c_out, c_in), lambda i: (0, 0)),  # full weight
            pl.BlockSpec((c_in, nl), lambda i: (0, 0)),     # full activations
        ],
        out_specs=pl.BlockSpec((c_out, nl), lambda i: (0, 0)),
    )(w.astype(jnp.float32), x2)

    # (C_out, N*L) -> (N, C_out, L)
    return jnp.transpose(out2.reshape(c_out, n, L), (1, 0, 2))


def _reference(x, w, b, eps=1e-5):
    # Faithful reference INCLUDING the conv bias, to verify the BN cancellation.
    y = jnp.einsum("oi,nil->nol", w, x) + b[None, :, None]
    mean = jnp.mean(y, axis=(0, 2), keepdims=True)
    var = jnp.mean((y - mean) ** 2, axis=(0, 2), keepdims=True)  # biased variance
    return (y - mean) * jax.lax.rsqrt(var + eps)


if __name__ == "__main__":
    # Small DenseLayer-consistent shapes: batch=2, in_channels=16, out_channels=32, seq=256.
    N, C_IN, C_OUT, L = 2, 16, 32, 256

    key = jax.random.PRNGKey(0)
    kx, kw, kb = jax.random.split(key, 3)
    x = jax.random.normal(kx, (N, C_IN, L), dtype=jnp.float32)
    # Conv1d weight is (C_out, C_in, 1) in torch; kernel_size=1 squeezed here.
    w = jax.random.normal(kw, (C_OUT, C_IN), dtype=jnp.float32) * 0.1
    b = jax.random.normal(kb, (C_OUT,), dtype=jnp.float32) * 0.1

    out = dense_layer_forward(x, w, b)
    out = jax.block_until_ready(out)

    ref = _reference(x, w, b)
    assert out.shape == (N, C_OUT, L)
    assert jnp.allclose(out, ref, atol=1e-4, rtol=1e-4), "mismatch vs JAX reference"

    print("KERNEL_OK")
</pallas_src>

<mosaic_0001>
module attributes {stable_mosaic.version = 11 : i64} {
  func.func @_dense_layer_kernel(%arg0: i32, %arg1: memref<32x16xf32, #tpu.memory_space<vmem>>, %arg2: memref<16x512xf32, #tpu.memory_space<vmem>>, %arg3: memref<32x512xf32, #tpu.memory_space<vmem>>) attributes {dimension_semantics = [#tpu.dimension_semantics<arbitrary>], iteration_bounds = array<i64: 1>, scalar_prefetch = 0 : i64, scratch_operands = 0 : i64, tpu.core_type = #tpu.core_type<tc>, window_params = [{pipeline_mode = #tpu.pipeline_mode<synchronous>, transform_indices = @transform_0, window_bounds = array<i64: 32, 16>}, {pipeline_mode = #tpu.pipeline_mode<synchronous>, transform_indices = @transform_1, window_bounds = array<i64: 16, 512>}, {pipeline_mode = #tpu.pipeline_mode<synchronous>, transform_indices = @transform_2, window_bounds = array<i64: 32, 512>}]} {
    %c0 = arith.constant 0 : index
    %c0_0 = arith.constant 0 : index
    %0 = vector.load %arg1[%c0, %c0_0] : memref<32x16xf32, #tpu.memory_space<vmem>>, vector<32x16xf32>
    %c0_1 = arith.constant 0 : index
    %c0_2 = arith.constant 0 : index
    %1 = vector.load %arg2[%c0_1, %c0_2] : memref<16x512xf32, #tpu.memory_space<vmem>>, vector<16x512xf32>
    %cst = arith.constant dense<0.000000e+00> : vector<32x512xf32>
    %2 = tpu.matmul %0, %1, %cst {dimension_numbers = #tpu.dot_dimension_numbers<[1], [0], [0], [1], [0, 0, 1, 1], [], []>} : vector<32x16xf32>, vector<16x512xf32>, vector<32x512xf32> -> vector<32x512xf32>
    %cst_3 = arith.constant dense<0.000000e+00> : vector<32xf32>
    %3 = vector.multi_reduction <add>, %2, %cst_3 [1] : vector<32x512xf32> to vector<32xf32>
    %4 = vector.shape_cast %3 : vector<32xf32> to vector<32x1xf32>
    %cst_4 = arith.constant 0.001953125 : f32
    %5 = vector.broadcast %cst_4 : f32 to vector<32x1xf32>
    %6 = arith.mulf %4, %5 : vector<32x1xf32>
    %7 = arith.mulf %2, %2 : vector<32x512xf32>
    %cst_5 = arith.constant dense<0.000000e+00> : vector<32xf32>
    %8 = vector.multi_reduction <add>, %7, %cst_5 [1] : vector<32x512xf32> to vector<32xf32>
    %9 = vector.shape_cast %8 : vector<32xf32> to vector<32x1xf32>
    %cst_6 = arith.constant 0.001953125 : f32
    %10 = vector.broadcast %cst_6 : f32 to vector<32x1xf32>
    %11 = arith.mulf %9, %10 : vector<32x1xf32>
    %12 = arith.mulf %6, %6 : vector<32x1xf32>
    %13 = arith.subf %11, %12 : vector<32x1xf32>
    %cst_7 = arith.constant 0.000000e+00 : f32
    %14 = vector.broadcast %cst_7 : f32 to vector<32x1xf32>
    %15 = arith.maximumf %13, %14 : vector<32x1xf32>
    %16 = vector.broadcast %6 : vector<32x1xf32> to vector<32x512xf32>
    %17 = arith.subf %2, %16 : vector<32x512xf32>
    %cst_8 = arith.constant 9.99999974E-6 : f32
    %18 = vector.broadcast %cst_8 : f32 to vector<32x1xf32>
    %19 = arith.addf %15, %18 : vector<32x1xf32>
    %20 = math.rsqrt %19 : vector<32x1xf32>
    %21 = vector.broadcast %20 : vector<32x1xf32> to vector<32x512xf32>
    %22 = arith.mulf %17, %21 : vector<32x512xf32>
    %c0_9 = arith.constant 0 : index
    %c0_10 = arith.constant 0 : index
    %23 = vector.load %arg3[%c0_9, %c0_10] : memref<32x512xf32, #tpu.memory_space<vmem>>, vector<32x512xf32>
    tpu.vector_store %arg3[%c0_9, %c0_10], %22 {strides = array<i32>} : memref<32x512xf32, #tpu.memory_space<vmem>>, vector<32x512xf32>,
    return
  }
  func.func @transform_0(%arg0: i32) -> (i32, i32) {
    %c0_i32 = arith.constant 0 : i32
    %c0_i32_0 = arith.constant 0 : i32
    %c0_i32_1 = arith.constant 0 : i32
    return %c0_i32, %c0_i32_0 : i32, i32
  }
  func.func @transform_1(%arg0: i32) -> (i32, i32) {
    %c0_i32 = arith.constant 0 : i32
    %c0_i32_0 = arith.constant 0 : i32
    %c0_i32_1 = arith.constant 0 : i32
    return %c0_i32, %c0_i32_0 : i32, i32
  }
  func.func @transform_2(%arg0: i32) -> (i32, i32) {
    %c0_i32 = arith.constant 0 : i32
    %c0_i32_0 = arith.constant 0 : i32
    %c0_i32_1 = arith.constant 0 : i32
    return %c0_i32, %c0_i32_0 : i32, i32
  }
}

</mosaic_0001>

<llo_original>
// kernel: tpu_custom_call.1
$region0: #{tpu_custom_call.1}
  #allocation0 [shape = 'u32[]', space=smem, size = 0x4, offset = 0x4, fixed_abs, tag = 'smem constant byte address 0x4 - core index']
  #allocation1 [shape = 'u32[144,128]{1,0:T(1,128)}', space=vmem, size = 0x12000, scoped, tag = 'internal scratch']
  %s0 = inlined_call_operand.vmem [shape: f32[32,16], index: 0, kind: input, shape index: {}]
  %s1 = inlined_call_operand.hbm [shape: f32[16,512], index: 1, kind: input, shape index: {}]
  %s2 = inlined_call_operand.hbm [shape: f32[32,512], index: 2, kind: output, shape index: {}]
  %s3 = sld [smem:[#allocation0]]
  $region22: #{tpu_custom_call.1} parent=0
    _
  %s5 = ssub.s32 1, %s3
  %s6 = scalar_select 0, %s5, %s3
  $region1: #{tpu_custom_call.1} parent=0
    #allocation2 [shape = 'u8[32768]{0}', space=vmem, size = 0x8000, scoped, tag = 'input window, operand 1, single buffered']
    #allocation3 [shape = 's32[1]{0}', space=sflag, size = 0x4, scoped, tag = 'scoped memory for tpu_custom_call.1']
    #allocation4 [shape = 's32[1]{0}', space=sflag, size = 0x4, scoped, tag = 'scoped memory for tpu_custom_call.1']
    #allocation5 [shape = 'u8[65536]{0}', space=vmem, size = 0x10000, scoped, tag = 'output window, operand 0, single buffered']
    %7 = vsyncpa [#allocation3], 0
    %8 = vsyncpa [#allocation4], 0
    // Predicated region
    $region2: #{tpu_custom_call.1} parent=1 // pred_check
      _
    $region3: #{tpu_custom_call.1} parent=1 // pred_check_branch
      %10 = sbr.rel (0) target = $region5
    $region4: #{tpu_custom_call.1} parent=1 // pred_region
      _
    $region5: #{tpu_custom_call.1} parent=1 // pred_fallthru
      _
    // Predicated region
    $region6: #{tpu_custom_call.1} parent=1 // pred_check
      _
    $region7: #{tpu_custom_call.1} parent=1 // pred_check_branch
      %12 = sbr.rel (0) target = $region9
    $region8: #{tpu_custom_call.1} parent=1 // pred_region
      %s14 = ssub.s32 1024, 1024
      %15 = vsyncadd [#allocation3], %s14
      %s16 = sshll.u32 [#allocation2], 4
      %s17 = int_to_ptr.vmem [resolvable:$true] %s16
      %22 = dma.hbm_to_vmem [thread:$0]  %s1, 1024, %s17, [#allocation3], 512, 512, 32
    $region9: #{tpu_custom_call.1} parent=1 // pred_fallthru
      _
    // Predicated region
    $region10: #{tpu_custom_call.1} parent=1 // pred_check
      _
    $region11: #{tpu_custom_call.1} parent=1 // pred_check_branch
      %24 = sbr.rel (0) target = $region13
    $region12: #{tpu_custom_call.1} parent=1 // pred_region
      %25 = dma.done [#allocation3], 1024
    $region13: #{tpu_custom_call.1} parent=1 // pred_fallthru
      _
    %v26 = vld [vmem:[%s0] sm:$0xff]
    %v27 = vld [vmem:[%s0 + $0x8] sm:$0xff]
    %v28 = vld [vmem:[%s0 + $0x10] sm:$0xff]
    %v29 = vld [vmem:[%s0 + $0x18] sm:$0xff]
    %v30 = vld [vmem:[#allocation2] sm:$0xff]
    %v31 = vld [vmem:[#allocation2 + $0x8] sm:$0xff]
    %v32 = vld [vmem:[#allocation2 + $0x10] sm:$0xff]
    %v33 = vld [vmem:[#allocation2 + $0x18] sm:$0xff]
    %v34 = vld [vmem:[#allocation2 + $0x20] sm:$0xff]
    %v35 = vld [vmem:[#allocation2 + $0x28] sm:$0xff]
    %v36 = vld [vmem:[#allocation2 + $0x30] sm:$0xff]
    %v37 = vld [vmem:[#allocation2 + $0x38] sm:$0xff]
    %vm38 = vcmask 130048
    %v40 = vsel %vm38, %v26, 0
    %v43 = vsel %vm38, %v27, 0
    %v46 = vsel %vm38, %v28, 0
    %v49 = vsel %vm38, %v29, 0
    %51 = vmatprep.subr.mxu0 %v31
    %52 = vmatpush1.msra.mxu0 %v30
    %53 = vmatprep.subr.mxu0 %v35
    %54 = vmatpush1.msra.mxu0 %v34
    %55 = vmatprep.subr.mxu0 0.0
    %56 = vmatpush1.msra.mxu0 0.0
    %57 = vmatprep.subr.mxu0 0.0
    %58 = vmatpush1.msra.mxu0 0.0
    %59 = vmatprep.subr.mxu0 0.0
    %60 = vmatpush1.msra.mxu0 0.0
    %61 = vmatprep.subr.mxu0 0.0
    %62 = vmatpush1.msra.mxu0 0.0
    %63 = vmatprep.subr.mxu0 0.0
    %64 = vmatpush1.msra.mxu0 0.0
    %65 = vmatprep.subr.mxu0 0.0
    %66 = vmatpush1.msra.mxu0 0.0
    %67 = vmatprep.subr.mxu0 0.0
    %68 = vmatpush1.msra.mxu0 0.0
    %69 = vmatprep.subr.mxu0 0.0
    %70 = vmatpush1.msra.mxu0 0.0
    %71 = vmatprep.subr.mxu0 0.0
    %72 = vmatpush1.msra.mxu0 0.0
    %73 = vmatprep.subr.mxu0 0.0
    %74 = vmatpush1.msra.mxu0 0.0
    %75 = vmatprep.subr.mxu0 0.0
    %76 = vmatpush1.msra.mxu0 0.0
    %77 = vmatprep.subr.mxu0 0.0
    %78 = vmatpush1.msra.mxu0 0.0
    %79 = vmatprep.subr.mxu0 0.0
    %80 = vmatpush1.msra.mxu0 0.0
    %81 = vmatprep.subr.mxu0 0.0
    %82 = vmatpush1.msra.mxu0 0.0
    %83 = vmatprep.subr.mxu0 0.0
    %84 = vmatpush1.msra.mxu0 0.0
    %85 = vmatprep.subr.mxu0 0.0
    %86 = vmatpush1.msra.mxu0 0.0
    %87 = vmatprep.subr.mxu0 0.0
    %88 = vmatpush1.msra.mxu0 0.0
    %89 = vmatprep.subr.mxu0 0.0
    %90 = vmatpush1.msra.mxu0 0.0
    %91 = vmatprep.subr.mxu0 0.0
    %92 = vmatpush1.msra.mxu0 0.0
    %93 = vmatprep.subr.mxu0 0.0
    %94 = vmatpush1.msra.mxu0 0.0
    %95 = vmatprep.subr.mxu0 0.0
    %96 = vmatpush1.msra.mxu0 0.0
    %97 = vmatprep.subr.mxu0 0.0
    %98 = vmatpush1.msra.mxu0 0.0
    %99 = vmatprep.subr.mxu0 0.0
    %100 = vmatpush1.msra.mxu0 0.0
    %101 = vmatprep.subr.mxu0 0.0
    %102 = vmatpush1.msra.mxu0 0.0
    %103 = vmatprep.subr.mxu0 0.0
    %104 = vmatpush1.msra.mxu0 0.0
    %105 = vmatprep.subr.mxu0 0.0
    %106 = vmatpush1.msra.mxu0 0.0
    %107 = vmatprep.subr.mxu0 0.0
    %108 = vmatpush1.msra.mxu0 0.0
    %109 = vmatprep.subr.mxu0 0.0
    %110 = vmatpush1.msra.mxu0 0.0
    %111 = vmatprep.subr.mxu0 0.0
    %112 = vmatpush1.msra.mxu0 0.0
    %113 = vmatprep.subr.mxu0 0.0
    %114 = vmatpush1.msra.mxu0 0.0
    %115 = vmatprep.mubr.f32.mxu0 0.0
    %116 = vmatmul.mubr.f32.gmra.mrb[0].mxu0 %v40
    %v117 = vpop.f32.mrb[0].mxu0
    %v118 = vadd.f32 0.0, %v117
    %v119 = vpop.f32.mrb[0].mxu0
    %v120 = vadd.f32 0.0, %v119
    %121 = vmatprep.mubr.f32.mxu0 0.0
    %122 = vmatmul.mubr.f32.gmra.mrb[0].mxu0 %v43
    %v123 = vpop.f32.mrb[0].mxu0
    %v124 = vadd.f32 0.0, %v123
    %v125 = vpop.f32.mrb[0].mxu0
    %v126 = vadd.f32 0.0, %v125
    %127 = vmatprep.mubr.f32.mxu0 0.0
    %128 = vmatmul.mubr.f32.gmra.mrb[0].mxu0 %v46
    %v129 = vpop.f32.mrb[0].mxu0
    %v130 = vadd.f32 0.0, %v129
    %v131 = vpop.f32.mrb[0].mxu0
    %v132 = vadd.f32 0.0, %v131
    %133 = vmatprep.mubr.f32.mxu0 0.0
    %134 = vmatmul.mubr.f32.gmra.mrb[0].mxu0 %v49
    %v135 = vpop.f32.mrb[0].mxu0
    %v136 = vadd.f32 0.0, %v135
    %v137 = vpop.f32.mrb[0].mxu0
    %v138 = vadd.f32 0.0, %v137
    %139 = vdwg.mxu0
    %140 = vmatprep.subr.mxu0 %v33
    %141 = vmatpush1.msra.mxu0 %v32
    %142 = vmatprep.subr.mxu0 %v37
    %143 = vmatpush1.msra.mxu0 %v36
    %144 = vmatprep.subr.mxu0 0.0
    %145 = vmatpush1.msra.mxu0 0.0
    %146 = vmatprep.subr.mxu0 0.0
    %147 = vmatpush1.msra.mxu0 0.0
    %148 = vmatprep.subr.mxu0 0.0
    %149 = vmatpush1.msra.mxu0 0.0
    %150 = vmatprep.subr.mxu0 0.0
    %151 = vmatpush1.msra.mxu0 0.0
    %152 = vmatprep.subr.mxu0 0.0
    %153 = vmatpush1.msra.mxu0 0.0
    %154 = vmatprep.subr.mxu0 0.0
    %155 = vmatpush1.msra.mxu0 0.0
    %156 = vmatprep.subr.mxu0 0.0
    %157 = vmatpush1.msra.mxu0 0.0
    %158 = vmatprep.subr.mxu0 0.0
    %159 = vmatpush1.msra.mxu0 0.0
    %160 = vmatprep.subr.mxu0 0.0
    %161 = vmatpush1.msra.mxu0 0.0
    %162 = vmatprep.subr.mxu0 0.0
    %163 = vmatpush1.msra.mxu0 0.0
    %164 = vmatprep.subr.mxu0 0.0
    %165 = vmatpush1.msra.mxu0 0.0
    %166 = vmatprep.subr.mxu0 0.0
    %167 = vmatpush1.msra.mxu0 0.0
    %168 = vmatprep.subr.mxu0 0.0
    %169 = vmatpush1.msra.mxu0 0.0
    %170 = vmatprep.subr.mxu0 0.0
    %171 = vmatpush1.msra.mxu0 0.0
    %172 = vmatprep.subr.mxu0 0.0
    %173 = vmatpush1.msra.mxu0 0.0
    %174 = vmatprep.subr.mxu0 0.0
    %175 = vmatpush1.msra.mxu0 0.0
    %176 = vmatprep.subr.mxu0 0.0
    %177 = vmatpush1.msra.mxu0 0.0
    %178 = vmatprep.subr.mxu0 0.0
    %179 = vmatpush1.msra.mxu0 0.0
    %180 = vmatprep.subr.mxu0 0.0
    %181 = vmatpush1.msra.mxu0 0.0
    %182 = vmatprep.subr.mxu0 0.0
    %183 = vmatpush1.msra.mxu0 0.0
    %184 = vmatprep.subr.mxu0 0.0
    %185 = vmatpush1.msra.mxu0 0.0
    %186 = vmatprep.subr.mxu0 0.0
    %187 = vmatpush1.msra.mxu0 0.0
    %188 = vmatprep.subr.mxu0 0.0
    %189 = vmatpush1.msra.mxu0 0.0
    %190 = vmatprep.subr.mxu0 0.0
    %191 = vmatpush1.msra.mxu0 0.0
    %192 = vmatprep.subr.mxu0 0.0
    %193 = vmatpush1.msra.mxu0 0.0
    %194 = vmatprep.subr.mxu0 0.0
    %195 = vmatpush1.msra.mxu0 0.0
    %196 = vmatprep.subr.mxu0 0.0
    %197 = vmatpush1.msra.mxu0 0.0
    %198 = vmatprep.subr.mxu0 0.0
    %199 = vmatpush1.msra.mxu0 0.0
    %200 = vmatprep.subr.mxu0 0.0
    %201 = vmatpush1.msra.mxu0 0.0
    %202 = vmatprep.subr.mxu0 0.0
    %203 = vmatpush1.msra.mxu0 0.0
    %204 = vmatprep.mubr.f32.mxu0 0.0
    %205 = vmatmul.mubr.f32.gmra.mrb[0].mxu0 %v40
    %v206 = vpop.f32.mrb[0].mxu0
    %v207 = vadd.f32 0.0, %v206
    %v208 = vpop.f32.mrb[0].mxu0
    %v209 = vadd.f32 0.0, %v208
    %210 = vmatprep.mubr.f32.mxu0 0.0
    %211 = vmatmul.mubr.f32.gmra.mrb[0].mxu0 %v43
    %v212 = vpop.f32.mrb[0].mxu0
    %v213 = vadd.f32 0.0, %v212
    %v214 = vpop.f32.mrb[0].mxu0
    %v215 = vadd.f32 0.0, %v214
    %216 = vmatprep.mubr.f32.mxu0 0.0
    %217 = vmatmul.mubr.f32.gmra.mrb[0].mxu0 %v46
    %v218 = vpop.f32.mrb[0].mxu0
    %v219 = vadd.f32 0.0, %v218
    %v220 = vpop.f32.mrb[0].mxu0
    %v221 = vadd.f32 0.0, %v220
    %222 = vmatprep.mubr.f32.mxu0 0.0
    %223 = vmatmul.mubr.f32.gmra.mrb[0].mxu0 %v49
    %v224 = vpop.f32.mrb[0].mxu0
    %v225 = vadd.f32 0.0, %v224
    %v226 = vpop.f32.mrb[0].mxu0
    %v227 = vadd.f32 0.0, %v226
    %228 = vdwg.mxu0
    %v229 = vadd.f32 %v118, %v120
    %v230 = vadd.f32 %v229, %v207
    %v231 = vadd.f32 %v230, %v209
    %232 = vadd.xlane.f32.xlu0 %v231
    %v233 = vpop.xlane.xlu0 %232
    %v234 = vadd.f32 %v124, %v126
    %v235 = vadd.f32 %v234, %v213
    %v236 = vadd.f32 %v235, %v215
    %237 = vadd.xlane.f32.xlu0 %v236
    %v238 = vpop.xlane.xlu0 %237
    %v239 = vadd.f32 %v130, %v132
    %v240 = vadd.f32 %v239, %v219
    %v241 = vadd.f32 %v240, %v221
    %242 = vadd.xlane.f32.xlu0 %v241
    %v243 = vpop.xlane.xlu0 %242
    %v244 = vadd.f32 %v136, %v138
    %v245 = vadd.f32 %v244, %v225
    %v246 = vadd.f32 %v245, %v227
    %247 = vadd.xlane.f32.xlu0 %v246
    %v248 = vpop.xlane.xlu0 %247
    %v249 = vmul.f32 %v233, 0.001953125
    %v250 = vmul.f32 %v238, 0.001953125
    %v251 = vmul.f32 %v243, 0.001953125
    %v252 = vmul.f32 %v248, 0.001953125
    %v253 = vmul.f32 %v118, %v118
    %v254 = vmul.f32 %v120, %v120
    %v255 = vmul.f32 %v207, %v207
    %v256 = vmul.f32 %v209, %v209
    %v257 = vmul.f32 %v124, %v124
    %v258 = vmul.f32 %v126, %v126
    %v259 = vmul.f32 %v213, %v213
    %v260 = vmul.f32 %v215, %v215
    %v261 = vmul.f32 %v130, %v130
    %v262 = vmul.f32 %v132, %v132
    %v263 = vmul.f32 %v219, %v219
    %v264 = vmul.f32 %v221, %v221
    %v265 = vmul.f32 %v136, %v136
    %v266 = vmul.f32 %v138, %v138
    %v267 = vmul.f32 %v225, %v225
    %v268 = vmul.f32 %v227, %v227
    %v269 = vadd.f32 %v253, %v254
    %v270 = vadd.f32 %v269, %v255
    %v271 = vadd.f32 %v270, %v256
    %272 = vadd.xlane.f32.xlu0 %v271
    %v273 = vpop.xlane.xlu0 %272
    %v274 = vadd.f32 %v257, %v258
    %v275 = vadd.f32 %v274, %v259
    %v276 = vadd.f32 %v275, %v260
    %277 = vadd.xlane.f32.xlu0 %v276
    %v278 = vpop.xlane.xlu0 %277
    %v279 = vadd.f32 %v261, %v262
    %v280 = vadd.f32 %v279, %v263
    %v281 = vadd.f32 %v280, %v264
    %282 = vadd.xlane.f32.xlu0 %v281
    %v283 = vpop.xlane.xlu0 %282
    %v284 = vadd.f32 %v265, %v266
    %v285 = vadd.f32 %v284, %v267
    %v286 = vadd.f32 %v285, %v268
    %287 = vadd.xlane.f32.xlu0 %v286
    %v288 = vpop.xlane.xlu0 %287
    %v289 = vmul.f32 %v273, 0.001953125
    %v290 = vmul.f32 %v278, 0.001953125
    %v291 = vmul.f32 %v283, 0.001953125
    %v292 = vmul.f32 %v288, 0.001953125
    %v293 = vmul.f32 %v249, %v249
    %v294 = vmul.f32 %v250, %v250
    %v295 = vmul.f32 %v251, %v251
    %v296 = vmul.f32 %v252, %v252
    %v297 = vsub.f32 %v289, %v293
    %v298 = vsub.f32 %v290, %v294
    %v299 = vsub.f32 %v291, %v295
    %v300 = vsub.f32 %v292, %v296
    %v301 = vmax.f32 %v297, 0.0
    %v302 = vmax.f32 %v298, 0.0
    %v303 = vmax.f32 %v299, 0.0
    %v304 = vmax.f32 %v300, 0.0
    %v305 = vsub.f32 %v118, %v249
    %v306 = vsub.f32 %v120, %v249
    %v307 = vsub.f32 %v207, %v249
    %v308 = vsub.f32 %v209, %v249
    %v309 = vsub.f32 %v124, %v250
    %v310 = vsub.f32 %v126, %v250
    %v311 = vsub.f32 %v213, %v250
    %v312 = vsub.f32 %v215, %v250
    %v313 = vsub.f32 %v130, %v251
    %v314 = vsub.f32 %v132, %v251
    %v315 = vsub.f32 %v219, %v251
    %v316 = vsub.f32 %v221, %v251
    %v317 = vsub.f32 %v136, %v252
    %v318 = vsub.f32 %v138, %v252
    %v319 = vsub.f32 %v225, %v252
    %v320 = vsub.f32 %v227, %v252
    %v321 = vadd.f32 %v301, 1e-05
    %v322 = vadd.f32 %v302, 1e-05
    %v323 = vadd.f32 %v303, 1e-05
    %v324 = vadd.f32 %v304, 1e-05
    %v325 = vrsqrt.pop %v321
    %v326 = vrsqrt.pop %v322
    %v327 = vrsqrt.pop %v323
    %v328 = vrsqrt.pop %v324
    %v329 = vmul.f32 %v305, %v325
    %v330 = vmul.f32 %v306, %v325
    %v331 = vmul.f32 %v307, %v325
    %v332 = vmul.f32 %v308, %v325
    %v333 = vmul.f32 %v309, %v326
    %v334 = vmul.f32 %v310, %v326
    %v335 = vmul.f32 %v311, %v326
    %v336 = vmul.f32 %v312, %v326
    %v337 = vmul.f32 %v313, %v327
    %v338 = vmul.f32 %v314, %v327
    %v339 = vmul.f32 %v315, %v327
    %v340 = vmul.f32 %v316, %v327
    %v341 = vmul.f32 %v317, %v328
    %v342 = vmul.f32 %v318, %v328
    %v343 = vmul.f32 %v319, %v328
    %v344 = vmul.f32 %v320, %v328
    %345 = vst [vmem:[#allocation5] sm:$0xff] %v329
    %346 = vst [vmem:[#allocation5 + $0x8] sm:$0xff] %v330
    %347 = vst [vmem:[#allocation5 + $0x10] sm:$0xff] %v331
    %348 = vst [vmem:[#allocation5 + $0x18] sm:$0xff] %v332
    %349 = vst [vmem:[#allocation5 + $0x20] sm:$0xff] %v333
    %350 = vst [vmem:[#allocation5 + $0x28] sm:$0xff] %v334
    %351 = vst [vmem:[#allocation5 + $0x30] sm:$0xff] %v335
    %352 = vst [vmem:[#allocation5 + $0x38] sm:$0xff] %v336
    %353 = vst [vmem:[#allocation5 + $0x40] sm:$0xff] %v337
    %354 = vst [vmem:[#allocation5 + $0x48] sm:$0xff] %v338
    %355 = vst [vmem:[#allocation5 + $0x50] sm:$0xff] %v339
    %356 = vst [vmem:[#allocation5 + $0x58] sm:$0xff] %v340
    %357 = vst [vmem:[#allocation5 + $0x60] sm:$0xff] %v341
    %358 = vst [vmem:[#allocation5 + $0x68] sm:$0xff] %v342
    %359 = vst [vmem:[#allocation5 + $0x70] sm:$0xff] %v343
    %360 = vst [vmem:[#allocation5 + $0x78] sm:$0xff] %v344
    // Predicated region
    $region14: #{tpu_custom_call.1} parent=1 // pred_check
      _
    $region15: #{tpu_custom_call.1} parent=1 // pred_check_branch
      %362 = sbr.rel (0) target = $region17
    $region16: #{tpu_custom_call.1} parent=1 // pred_region
      %s364 = ssub.s32 2048, 2048
      %365 = vsyncadd [#allocation4], %s364
      %s366 = sshll.u32 [#allocation5], 4
      %s367 = int_to_ptr.vmem [resolvable:$true] %s366
      %372 = dma.vmem_to_hbm [thread:$0]  %s367, 2048, %s2, [#allocation4], 512, 512, 32
    $region17: #{tpu_custom_call.1} parent=1 // pred_fallthru
      _
    // Predicated region
    $region18: #{tpu_custom_call.1} parent=1 // pred_check
      _
    $region19: #{tpu_custom_call.1} parent=1 // pred_check_branch
      %374 = sbr.rel (0) target = $region21
    $region20: #{tpu_custom_call.1} parent=1 // pred_region
      %375 = dma.done [#allocation4], 2048
    $region21: #{tpu_custom_call.1} parent=1 // pred_fallthru
      _
    %376 = vsyncpa [#allocation3], 1
    %377 = vsyncpa [#allocation4], 1

</llo_original>
